<compile_context>
chip_gen: v7x
topology: tpu7x:2x2x1
jax: 0.10.0
libtpu: 0.0.40
codegen_flags: <defaults>
</compile_context>

<pallas_src>
import functools
import math

import jax
import jax.numpy as jnp
from jax.experimental import pallas as pl
from jax.experimental.pallas import tpu as pltpu


LANE = 128       # lane width (output padded to this)
SUBLANE = 8      # f32 sublane height (batch padded to a multiple of this)
TM_MAX = 2048    # max batch-tile rows (double-buffered tiles stay << VMEM)


def _round_up(x, m):
    return ((x + m - 1) // m) * m


# ----------------------------------------------------------------------------
# Fused kernel body
#   emb = tanh(graphs @ Wg + bg)                      (graph_model_actor)
#   h1  = relu(emb @ W1e [+ a_cont @ W1a] + b1)       (== relu(concat @ W1 + b1))
#   h2  = relu(h1 @ W2 + b2)
#   out = h2 @ W3_pad + b3_pad                        (lane-padded to 128)
# Matmul operands in io_dtype (f32 or bf16); accumulation / bias / nonlinear
# math always in f32 (safe on v5e too: no bf16 VPU/EUP there).
# ----------------------------------------------------------------------------
def _fused_body(g_ref, wg_ref, bg_ref, w1e_ref, b1_ref, w2_ref, b2_ref,
                w3_ref, b3_ref, o_ref, a_ref=None, w1a_ref=None):
    cdt = w1e_ref.dtype   # matmul operand dtype

    emb32 = jnp.tanh(
        jnp.dot(g_ref[...], wg_ref[...], preferred_element_type=jnp.float32)
        + bg_ref[...])
    emb = emb32.astype(cdt)

    h1 = jnp.dot(emb, w1e_ref[...], preferred_element_type=jnp.float32)
    if a_ref is not None:   # concat eliminated via W1 row split
        h1 = h1 + jnp.dot(a_ref[...], w1a_ref[...],
                          preferred_element_type=jnp.float32)
    h1 = jnp.maximum(h1 + b1_ref[...], 0.0).astype(cdt)       # F.relu(h1(...))

    h2 = jnp.maximum(
        jnp.dot(h1, w2_ref[...], preferred_element_type=jnp.float32)
        + b2_ref[...], 0.0).astype(cdt)                        # F.relu(h2(...))

    a = jnp.dot(h2, w3_ref[...], preferred_element_type=jnp.float32) + b3_ref[...]
    o_ref[...] = a.astype(o_ref.dtype)                         # self._h3(...)


def _kernel_with_acont(g_ref, a_ref, wg_ref, bg_ref, w1e_ref, w1a_ref, b1_ref,
                       w2_ref, b2_ref, w3_ref, b3_ref, o_ref):
    _fused_body(g_ref, wg_ref, bg_ref, w1e_ref, b1_ref, w2_ref, b2_ref,
                w3_ref, b3_ref, o_ref, a_ref=a_ref, w1a_ref=w1a_ref)


def _kernel_no_acont(g_ref, wg_ref, bg_ref, w1e_ref, b1_ref,
                     w2_ref, b2_ref, w3_ref, b3_ref, o_ref):
    _fused_body(g_ref, wg_ref, bg_ref, w1e_ref, b1_ref, w2_ref, b2_ref,
                w3_ref, b3_ref, o_ref)


# ----------------------------------------------------------------------------
# Wrapper: padding, W1 split, batch grid, lane-dense output.  One jit.
# ----------------------------------------------------------------------------
@functools.partial(jax.jit, static_argnames=("io_dtype", "return_padded"))
def actor_network_graph_forward(params, graph_params, state_goals,
                                state_graphs, a_cont=None,
                                io_dtype=jnp.float32, return_padded=False):
    # state_goals is accepted but unused, exactly as in the PyTorch forward.
    del state_goals

    graphs = jnp.squeeze(state_graphs, axis=1).astype(io_dtype)    # (B, G)
    B, G = graphs.shape

    wg = graph_params['wg'].astype(io_dtype)                       # (G, E)
    bg = graph_params['bg'].astype(jnp.float32)                    # (1, E)
    E = wg.shape[1]

    w1 = params['w1']                                              # (n_in, F)
    F_ = w1.shape[1]
    n_output = params['w3'].shape[1]

    b1 = params['b1'].astype(jnp.float32)
    w2 = params['w2'].astype(io_dtype)
    b2 = params['b2'].astype(jnp.float32)

    has_a = a_cont is not None
    if has_a:
        a_in = a_cont.astype(io_dtype)                             # (B, A)
        A = a_in.shape[1]
        assert w1.shape[0] == E + A, (
            f"w1 rows {w1.shape[0]} != embed_dim {E} + a_cont dim {A}")
        w1e = w1[:E].astype(io_dtype)
        w1a = w1[E:].astype(io_dtype)
    else:
        assert w1.shape[0] == E, (
            f"w1 rows {w1.shape[0]} != embed_dim {E} (a_cont is None)")
        w1e = w1.astype(io_dtype)

    # Lane-dense output: pad W3/b3 columns to a multiple of 128 with zeros.
    n_pad = _round_up(n_output, LANE)
    w3 = params['w3'].astype(io_dtype)
    b3 = params['b3'].astype(jnp.float32)
    if n_pad != n_output:
        w3p = jnp.zeros((F_, n_pad), io_dtype).at[:, :n_output].set(w3)
        b3p = jnp.zeros((1, n_pad), jnp.float32).at[:, :n_output].set(b3)
    else:
        w3p, b3p = w3, b3

    # Batch tiling: sublane multiple; prefer >= 2 tiles so both v7x
    # TensorCores get work; cap at TM_MAX for VMEM headroom.
    b_pad8 = _round_up(B, SUBLANE)
    if b_pad8 > SUBLANE:
        tm = min(TM_MAX, _round_up(pl.cdiv(b_pad8, 2), SUBLANE))
    else:
        tm = b_pad8
    b_pad = _round_up(B, tm)

    # Skip the padding copies entirely when the batch is already aligned.
    if b_pad != B:
        graphs_p = jnp.zeros((b_pad, G), io_dtype).at[:B].set(graphs)
    else:
        graphs_p = graphs
    if has_a:
        if b_pad != B:
            a_p = jnp.zeros((b_pad, A), io_dtype).at[:B].set(a_in)
        else:
            a_p = a_in

    grid = (b_pad // tm,)
    batch_spec = lambda cols: pl.BlockSpec((tm, cols), lambda i: (i, 0))
    const_spec = lambda shape: pl.BlockSpec(shape, lambda i: (0, 0))

    if has_a:
        kernel = _kernel_with_acont
        in_specs = [
            batch_spec(G),                 # graphs tile
            batch_spec(A),                 # a_cont tile
            const_spec((G, E)),            # Wg   (resident)
            const_spec((1, E)),            # bg
            const_spec((E, F_)),           # W1e
            const_spec((A, F_)),           # W1a
            const_spec((1, F_)),           # b1
            const_spec((F_, F_)),          # W2
            const_spec((1, F_)),           # b2
            const_spec((F_, n_pad)),       # W3 (lane-padded)
            const_spec((1, n_pad)),        # b3 (lane-padded)
        ]
        args = (graphs_p, a_p, wg, bg, w1e, w1a, b1, w2, b2, w3p, b3p)
    else:
        kernel = _kernel_no_acont
        in_specs = [
            batch_spec(G),                 # graphs tile
            const_spec((G, E)),            # Wg
            const_spec((1, E)),            # bg
            const_spec((E, F_)),           # W1 (== W1e)
            const_spec((1, F_)),           # b1
            const_spec((F_, F_)),          # W2
            const_spec((1, F_)),           # b2
            const_spec((F_, n_pad)),       # W3 (lane-padded)
            const_spec((1, n_pad)),        # b3 (lane-padded)
        ]
        args = (graphs_p, wg, bg, w1e, b1, w2, b2, w3p, b3p)

    out = pl.pallas_call(
        kernel,
        out_shape=jax.ShapeDtypeStruct((b_pad, n_pad), io_dtype),
        grid=grid,
        in_specs=in_specs,
        out_specs=pl.BlockSpec((tm, n_pad), lambda i: (i, 0)),
        compiler_params=pltpu.CompilerParams(
            dimension_semantics=("parallel",)),
    )(*args)

    if return_padded:
        # Consumers that can read a (b_pad, 128) slab avoid one extra HBM
        # round trip of the padded output.  Padded rows contain garbage
        # (tanh(bg) fed through the MLP) and padded columns are exact zeros.
        return out
    # Slice off batch padding and lane padding (fused under this jit).
    return out[:B, :n_output]


# ----------------------------------------------------------------------------
# Deterministic parameter init (mirrors the PyTorch __init__)
# ----------------------------------------------------------------------------
def xavier_uniform(key, fan_in, fan_out, gain):
    bound = gain * math.sqrt(6.0 / (fan_in + fan_out))
    # stored transposed: (in_features, out_features)
    return jax.random.uniform(key, (fan_in, fan_out), jnp.float32, -bound, bound)


def linear_bias(key, fan_in, fan_out):
    # PyTorch default nn.Linear bias init: U(-1/sqrt(fan_in), 1/sqrt(fan_in))
    bound = 1.0 / math.sqrt(fan_in)
    return jax.random.uniform(key, (1, fan_out), jnp.float32, -bound, bound)


def make_actor_params(key, n_input, n_features, n_output):
    ks = jax.random.split(key, 6)
    gain_relu = math.sqrt(2.0)   # nn.init.calculate_gain('relu')
    gain_lin = 1.0               # nn.init.calculate_gain('linear')
    return dict(
        w1=xavier_uniform(ks[0], n_input, n_features, gain_relu),
        b1=linear_bias(ks[1], n_input, n_features),
        w2=xavier_uniform(ks[2], n_features, n_features, gain_relu),
        b2=linear_bias(ks[3], n_features, n_features),
        w3=xavier_uniform(ks[4], n_features, n_output, gain_lin),
        b3=linear_bias(ks[5], n_features, n_output),
    )


# ----------------------------------------------------------------------------
# graph_model_actor stand-in (externally injected nn.Module in the original).
# TODO(synk): the real graph_model_actor is passed at construction time and is
# not defined by this module; modelled here as a deterministic linear+tanh
# whose parameters are fused into the Pallas kernel.
# ----------------------------------------------------------------------------
def make_graph_model_params(key, graph_dim, embed_dim):
    kw, kb = jax.random.split(key)
    bound = 1.0 / math.sqrt(graph_dim)
    return dict(
        wg=jax.random.uniform(kw, (graph_dim, embed_dim), jnp.float32, -bound, bound),
        bg=jax.random.uniform(kb, (1, embed_dim), jnp.float32, -bound, bound),
    )


# ----------------------------------------------------------------------------
# Pure-JAX reference (matches the PyTorch forward) for a correctness check
# ----------------------------------------------------------------------------
def reference_forward(params, graph_params, state_graphs, a_cont):
    emb = jnp.tanh(jnp.einsum('bsg,ge->bse', state_graphs, graph_params['wg'])
                   + graph_params['bg'][None])
    x = jnp.squeeze(emb, axis=1).astype(jnp.float32)
    if a_cont is not None:
        x = jnp.concatenate([x, a_cont.astype(jnp.float32)], axis=1)
    h1 = jax.nn.relu(x @ params['w1'] + params['b1'])
    h2 = jax.nn.relu(h1 @ params['w2'] + params['b2'])
    return h2 @ params['w3'] + params['b3']


if __name__ == "__main__":
    key = jax.random.PRNGKey(0)
    k_graph, k_params, k_sg, k_g, k_a = jax.random.split(key, 5)

    # Small shapes consistent with the module's forward:
    batch = 2
    graph_dim = 16      # raw per-graph feature dim fed to graph_model_actor
    embed_dim = 24      # graph embedding dim
    action_dim = 8      # a_cont dim
    n_input = embed_dim + action_dim   # input_shape[-1] == 32
    n_features = 32
    n_output = 8        # output_shape[0]

    graph_params = make_graph_model_params(k_graph, graph_dim, embed_dim)
    params = make_actor_params(k_params, n_input, n_features, n_output)

    state_goals = jax.random.normal(k_sg, (batch, 6), jnp.float32)      # unused
    state_graphs = jax.random.normal(k_g, (batch, 1, graph_dim), jnp.float32)
    a_cont = jax.random.normal(k_a, (batch, action_dim), jnp.float32)

    # f32 path (exact-ish match against the pure-JAX reference)
    out = actor_network_graph_forward(params, graph_params,
                                      state_goals, state_graphs, a_cont)
    out = jax.block_until_ready(out)

    ref = reference_forward(params, graph_params, state_graphs, a_cont)
    assert out.shape == (batch, n_output)
    assert jnp.allclose(out, ref, atol=1e-5, rtol=1e-5)

    # a_cont=None specialized path (module built with n_input == E)
    params_ng = make_actor_params(k_params, embed_dim, n_features, n_output)
    out_ng = jax.block_until_ready(
        actor_network_graph_forward(params_ng, graph_params,
                                    state_goals, state_graphs, None))
    ref_ng = reference_forward(params_ng, graph_params, state_graphs, None)
    assert jnp.allclose(out_ng, ref_ng, atol=1e-5, rtol=1e-5)

    # bf16 I/O path (native MXU precision on v6e/v7x, halved HBM traffic);
    # looser tolerance since operands are rounded to bf16.
    out_bf = jax.block_until_ready(
        actor_network_graph_forward(params, graph_params, state_goals,
                                    state_graphs, a_cont,
                                    io_dtype=jnp.bfloat16))
    assert out_bf.shape == (batch, n_output)
    assert jnp.allclose(out_bf.astype(jnp.float32), ref, atol=1e-1, rtol=1e-1)

    print("KERNEL_OK")
</pallas_src>

<mosaic_0001>
module attributes {stable_mosaic.version = 11 : i64} {
  func.func @_kernel_with_acont(%arg0: i32, %arg1: memref<8x16xf32, #tpu.memory_space<vmem>>, %arg2: memref<8x8xf32, #tpu.memory_space<vmem>>, %arg3: memref<16x24xf32, #tpu.memory_space<vmem>>, %arg4: memref<1x24xf32, #tpu.memory_space<vmem>>, %arg5: memref<24x32xf32, #tpu.memory_space<vmem>>, %arg6: memref<8x32xf32, #tpu.memory_space<vmem>>, %arg7: memref<1x32xf32, #tpu.memory_space<vmem>>, %arg8: memref<32x32xf32, #tpu.memory_space<vmem>>, %arg9: memref<1x32xf32, #tpu.memory_space<vmem>>, %arg10: memref<32x128xf32, #tpu.memory_space<vmem>>, %arg11: memref<1x128xf32, #tpu.memory_space<vmem>>, %arg12: memref<8x128xf32, #tpu.memory_space<vmem>>) attributes {dimension_semantics = [#tpu.dimension_semantics<parallel>], iteration_bounds = array<i64: 1>, scalar_prefetch = 0 : i64, scratch_operands = 0 : i64, tpu.core_type = #tpu.core_type<tc>, window_params = [{transform_indices = @transform_0, window_bounds = array<i64: 8, 16>}, {transform_indices = @transform_1, window_bounds = array<i64: 8, 8>}, {pipeline_mode = #tpu.pipeline_mode<synchronous>, transform_indices = @transform_2, window_bounds = array<i64: 16, 24>}, {pipeline_mode = #tpu.pipeline_mode<synchronous>, transform_indices = @transform_3, window_bounds = array<i64: 1, 24>}, {pipeline_mode = #tpu.pipeline_mode<synchronous>, transform_indices = @transform_4, window_bounds = array<i64: 24, 32>}, {pipeline_mode = #tpu.pipeline_mode<synchronous>, transform_indices = @transform_5, window_bounds = array<i64: 8, 32>}, {pipeline_mode = #tpu.pipeline_mode<synchronous>, transform_indices = @transform_6, window_bounds = array<i64: 1, 32>}, {pipeline_mode = #tpu.pipeline_mode<synchronous>, transform_indices = @transform_7, window_bounds = array<i64: 32, 32>}, {pipeline_mode = #tpu.pipeline_mode<synchronous>, transform_indices = @transform_8, window_bounds = array<i64: 1, 32>}, {pipeline_mode = #tpu.pipeline_mode<synchronous>, transform_indices = @transform_9, window_bounds = array<i64: 32, 128>}, {pipeline_mode = #tpu.pipeline_mode<synchronous>, transform_indices = @transform_10, window_bounds = array<i64: 1, 128>}, {transform_indices = @transform_11, window_bounds = array<i64: 8, 128>}]} {
    %c0 = arith.constant 0 : index
    %c0_0 = arith.constant 0 : index
    %0 = vector.load %arg1[%c0, %c0_0] : memref<8x16xf32, #tpu.memory_space<vmem>>, vector<8x16xf32>
    %c0_1 = arith.constant 0 : index
    %c0_2 = arith.constant 0 : index
    %1 = vector.load %arg3[%c0_1, %c0_2] : memref<16x24xf32, #tpu.memory_space<vmem>>, vector<16x24xf32>
    %cst = arith.constant dense<0.000000e+00> : vector<8x24xf32>
    %2 = tpu.matmul %0, %1, %cst {dimension_numbers = #tpu.dot_dimension_numbers<[1], [0], [0], [1], [0, 0, 1, 1], [], []>} : vector<8x16xf32>, vector<16x24xf32>, vector<8x24xf32> -> vector<8x24xf32>
    %c0_3 = arith.constant 0 : index
    %c0_4 = arith.constant 0 : index
    %3 = vector.load %arg4[%c0_3, %c0_4] : memref<1x24xf32, #tpu.memory_space<vmem>>, vector<1x24xf32>
    %4 = vector.broadcast %3 : vector<1x24xf32> to vector<8x24xf32>
    %5 = arith.addf %2, %4 : vector<8x24xf32>
    %6 = math.tanh %5 : vector<8x24xf32>
    %c0_5 = arith.constant 0 : index
    %c0_6 = arith.constant 0 : index
    %7 = vector.load %arg5[%c0_5, %c0_6] : memref<24x32xf32, #tpu.memory_space<vmem>>, vector<24x32xf32>
    %cst_7 = arith.constant dense<0.000000e+00> : vector<8x32xf32>
    %8 = tpu.matmul %6, %7, %cst_7 {dimension_numbers = #tpu.dot_dimension_numbers<[1], [0], [0], [1], [0, 0, 1, 1], [], []>} : vector<8x24xf32>, vector<24x32xf32>, vector<8x32xf32> -> vector<8x32xf32>
    %c0_8 = arith.constant 0 : index
    %c0_9 = arith.constant 0 : index
    %9 = vector.load %arg2[%c0_8, %c0_9] : memref<8x8xf32, #tpu.memory_space<vmem>>, vector<8x8xf32>
    %c0_10 = arith.constant 0 : index
    %c0_11 = arith.constant 0 : index
    %10 = vector.load %arg6[%c0_10, %c0_11] : memref<8x32xf32, #tpu.memory_space<vmem>>, vector<8x32xf32>
    %cst_12 = arith.constant dense<0.000000e+00> : vector<8x32xf32>
    %11 = tpu.matmul %9, %10, %cst_12 {dimension_numbers = #tpu.dot_dimension_numbers<[1], [0], [0], [1], [0, 0, 1, 1], [], []>} : vector<8x8xf32>, vector<8x32xf32>, vector<8x32xf32> -> vector<8x32xf32>
    %12 = arith.addf %8, %11 : vector<8x32xf32>
    %c0_13 = arith.constant 0 : index
    %c0_14 = arith.constant 0 : index
    %13 = vector.load %arg7[%c0_13, %c0_14] : memref<1x32xf32, #tpu.memory_space<vmem>>, vector<1x32xf32>
    %14 = vector.broadcast %13 : vector<1x32xf32> to vector<8x32xf32>
    %15 = arith.addf %12, %14 : vector<8x32xf32>
    %cst_15 = arith.constant 0.000000e+00 : f32
    %16 = vector.broadcast %cst_15 : f32 to vector<8x32xf32>
    %17 = arith.maximumf %15, %16 : vector<8x32xf32>
    %c0_16 = arith.constant 0 : index
    %c0_17 = arith.constant 0 : index
    %18 = vector.load %arg8[%c0_16, %c0_17] : memref<32x32xf32, #tpu.memory_space<vmem>>, vector<32x32xf32>
    %cst_18 = arith.constant dense<0.000000e+00> : vector<8x32xf32>
    %19 = tpu.matmul %17, %18, %cst_18 {dimension_numbers = #tpu.dot_dimension_numbers<[1], [0], [0], [1], [0, 0, 1, 1], [], []>} : vector<8x32xf32>, vector<32x32xf32>, vector<8x32xf32> -> vector<8x32xf32>
    %c0_19 = arith.constant 0 : index
    %c0_20 = arith.constant 0 : index
    %20 = vector.load %arg9[%c0_19, %c0_20] : memref<1x32xf32, #tpu.memory_space<vmem>>, vector<1x32xf32>
    %21 = vector.broadcast %20 : vector<1x32xf32> to vector<8x32xf32>
    %22 = arith.addf %19, %21 : vector<8x32xf32>
    %cst_21 = arith.constant 0.000000e+00 : f32
    %23 = vector.broadcast %cst_21 : f32 to vector<8x32xf32>
    %24 = arith.maximumf %22, %23 : vector<8x32xf32>
    %c0_22 = arith.constant 0 : index
    %c0_23 = arith.constant 0 : index
    %25 = vector.load %arg10[%c0_22, %c0_23] : memref<32x128xf32, #tpu.memory_space<vmem>>, vector<32x128xf32>
    %cst_24 = arith.constant dense<0.000000e+00> : vector<8x128xf32>
    %26 = tpu.matmul %24, %25, %cst_24 {dimension_numbers = #tpu.dot_dimension_numbers<[1], [0], [0], [1], [0, 0, 1, 1], [], []>} : vector<8x32xf32>, vector<32x128xf32>, vector<8x128xf32> -> vector<8x128xf32>
    %c0_25 = arith.constant 0 : index
    %c0_26 = arith.constant 0 : index
    %27 = vector.load %arg11[%c0_25, %c0_26] : memref<1x128xf32, #tpu.memory_space<vmem>>, vector<1x128xf32>
    %28 = vector.broadcast %27 : vector<1x128xf32> to vector<8x128xf32>
    %29 = arith.addf %26, %28 : vector<8x128xf32>
    %c0_27 = arith.constant 0 : index
    %c0_28 = arith.constant 0 : index
    %30 = vector.load %arg12[%c0_27, %c0_28] : memref<8x128xf32, #tpu.memory_space<vmem>>, vector<8x128xf32>
    tpu.vector_store %arg12[%c0_27, %c0_28], %29 {strides = array<i32>} : memref<8x128xf32, #tpu.memory_space<vmem>>, vector<8x128xf32>,
    return
  }
  func.func @transform_0(%arg0: i32) -> (i32, i32) {
    %c0_i32 = arith.constant 0 : i32
    %c0_i32_0 = arith.constant 0 : i32
    return %arg0, %c0_i32 : i32, i32
  }
  func.func @transform_1(%arg0: i32) -> (i32, i32) {
    %c0_i32 = arith.constant 0 : i32
    %c0_i32_0 = arith.constant 0 : i32
    return %arg0, %c0_i32 : i32, i32
  }
  func.func @transform_2(%arg0: i32) -> (i32, i32) {
    %c0_i32 = arith.constant 0 : i32
    %c0_i32_0 = arith.constant 0 : i32
    %c0_i32_1 = arith.constant 0 : i32
    return %c0_i32, %c0_i32_0 : i32, i32
  }
  func.func @transform_3(%arg0: i32) -> (i32, i32) {
    %c0_i32 = arith.constant 0 : i32
    %c0_i32_0 = arith.constant 0 : i32
    %c0_i32_1 = arith.constant 0 : i32
    return %c0_i32, %c0_i32_0 : i32, i32
  }
  func.func @transform_4(%arg0: i32) -> (i32, i32) {
    %c0_i32 = arith.constant 0 : i32
    %c0_i32_0 = arith.constant 0 : i32
    %c0_i32_1 = arith.constant 0 : i32
    return %c0_i32, %c0_i32_0 : i32, i32
  }
  func.func @transform_5(%arg0: i32) -> (i32, i32) {
    %c0_i32 = arith.constant 0 : i32
    %c0_i32_0 = arith.constant 0 : i32
    %c0_i32_1 = arith.constant 0 : i32
    return %c0_i32, %c0_i32_0 : i32, i32
  }
  func.func @transform_6(%arg0: i32) -> (i32, i32) {
    %c0_i32 = arith.constant 0 : i32
    %c0_i32_0 = arith.constant 0 : i32
    %c0_i32_1 = arith.constant 0 : i32
    return %c0_i32, %c0_i32_0 : i32, i32
  }
  func.func @transform_7(%arg0: i32) -> (i32, i32) {
    %c0_i32 = arith.constant 0 : i32
    %c0_i32_0 = arith.constant 0 : i32
    %c0_i32_1 = arith.constant 0 : i32
    return %c0_i32, %c0_i32_0 : i32, i32
  }
  func.func @transform_8(%arg0: i32) -> (i32, i32) {
    %c0_i32 = arith.constant 0 : i32
    %c0_i32_0 = arith.constant 0 : i32
    %c0_i32_1 = arith.constant 0 : i32
    return %c0_i32, %c0_i32_0 : i32, i32
  }
  func.func @transform_9(%arg0: i32) -> (i32, i32) {
    %c0_i32 = arith.constant 0 : i32
    %c0_i32_0 = arith.constant 0 : i32
    %c0_i32_1 = arith.constant 0 : i32
    return %c0_i32, %c0_i32_0 : i32, i32
  }
  func.func @transform_10(%arg0: i32) -> (i32, i32) {
    %c0_i32 = arith.constant 0 : i32
    %c0_i32_0 = arith.constant 0 : i32
    %c0_i32_1 = arith.constant 0 : i32
    return %c0_i32, %c0_i32_0 : i32, i32
  }
  func.func @transform_11(%arg0: i32) -> (i32, i32) {
    %c0_i32 = arith.constant 0 : i32
    %c0_i32_0 = arith.constant 0 : i32
    return %arg0, %c0_i32 : i32, i32
  }
}

</mosaic_0001>

<llo_original>
// kernel: actor_network_graph_forward.1
$region0: #{actor_network_graph_forward.1}
  #allocation0 [shape = 'u32[]', space=smem, size = 0x4, offset = 0x4, fixed_abs, tag = 'smem constant byte address 0x4 - core index']
  #allocation1 [shape = 'u32[144,128]{1,0:T(1,128)}', space=vmem, size = 0x12000, scoped, tag = 'internal scratch']
  %s0 = inlined_call_operand.vmem [shape: f32[8,16], index: 0, kind: input, shape index: {}]
  %s1 = inlined_call_operand.vmem [shape: f32[8,8], index: 1, kind: input, shape index: {}]
  %s2 = inlined_call_operand.vmem [shape: f32[16,24], index: 2, kind: input, shape index: {}]
  %s3 = inlined_call_operand.vmem [shape: f32[1,24], index: 3, kind: input, shape index: {}]
  %s4 = inlined_call_operand.vmem [shape: f32[24,32], index: 4, kind: input, shape index: {}]
  %s5 = inlined_call_operand.vmem [shape: f32[8,32], index: 5, kind: input, shape index: {}]
  %s6 = inlined_call_operand.vmem [shape: f32[1,32], index: 6, kind: input, shape index: {}]
  %s7 = inlined_call_operand.vmem [shape: f32[32,32], index: 7, kind: input, shape index: {}]
  %s8 = inlined_call_operand.vmem [shape: f32[1,32], index: 8, kind: input, shape index: {}]
  %s9 = inlined_call_operand.vmem [shape: f32[32,128], index: 9, kind: input, shape index: {}]
  %s10 = inlined_call_operand.vmem [shape: f32[1,128], index: 10, kind: input, shape index: {}]
  %s11 = inlined_call_operand.vmem [shape: f32[8,128], index: 11, kind: output, shape index: {}]
  %s12 = sld [smem:[#allocation0]]
  $region54: #{actor_network_graph_forward.1} parent=0
    _
  %s14 = ssub.s32 1, %s12
  %s15 = scalar_select 0, %s14, %s12
  // Predicated region
  $region2: #{actor_network_graph_forward.1} parent=0 // pred_check
    _
  $region3: #{actor_network_graph_forward.1} parent=0 // pred_check_branch
    %17 = sbr.rel (0) target = $region5
  $region4: #{actor_network_graph_forward.1} parent=0 // pred_region
    _
  $region5: #{actor_network_graph_forward.1} parent=0 // pred_fallthru
    _
  // Predicated region
  $region6: #{actor_network_graph_forward.1} parent=0 // pred_check
    _
  $region7: #{actor_network_graph_forward.1} parent=0 // pred_check_branch
    %19 = sbr.rel (0) target = $region9
  $region8: #{actor_network_graph_forward.1} parent=0 // pred_region
    _
  $region9: #{actor_network_graph_forward.1} parent=0 // pred_fallthru
    _
  // Predicated region
  $region10: #{actor_network_graph_forward.1} parent=0 // pred_check
    _
  $region11: #{actor_network_graph_forward.1} parent=0 // pred_check_branch
    %21 = sbr.rel (0) target = $region13
  $region12: #{actor_network_graph_forward.1} parent=0 // pred_region
    _
  $region13: #{actor_network_graph_forward.1} parent=0 // pred_fallthru
    _
  // Predicated region
  $region14: #{actor_network_graph_forward.1} parent=0 // pred_check
    _
  $region15: #{actor_network_graph_forward.1} parent=0 // pred_check_branch
    %23 = sbr.rel (0) target = $region17
  $region16: #{actor_network_graph_forward.1} parent=0 // pred_region
    _
  $region17: #{actor_network_graph_forward.1} parent=0 // pred_fallthru
    _
  // Predicated region
  $region18: #{actor_network_graph_forward.1} parent=0 // pred_check
    _
  $region19: #{actor_network_graph_forward.1} parent=0 // pred_check_branch
    %25 = sbr.rel (0) target = $region21
  $region20: #{actor_network_graph_forward.1} parent=0 // pred_region
    _
  $region21: #{actor_network_graph_forward.1} parent=0 // pred_fallthru
    _
  // Predicated region
  $region22: #{actor_network_graph_forward.1} parent=0 // pred_check
    _
  $region23: #{actor_network_graph_forward.1} parent=0 // pred_check_branch
    %27 = sbr.rel (0) target = $region25
  $region24: #{actor_network_graph_forward.1} parent=0 // pred_region
    _
  $region25: #{actor_network_graph_forward.1} parent=0 // pred_fallthru
    _
  // Predicated region
  $region26: #{actor_network_graph_forward.1} parent=0 // pred_check
    _
  $region27: #{actor_network_graph_forward.1} parent=0 // pred_check_branch
    %29 = sbr.rel (0) target = $region29
  $region28: #{actor_network_graph_forward.1} parent=0 // pred_region
    _
  $region29: #{actor_network_graph_forward.1} parent=0 // pred_fallthru
    _
  // Predicated region
  $region30: #{actor_network_graph_forward.1} parent=0 // pred_check
    _
  $region31: #{actor_network_graph_forward.1} parent=0 // pred_check_branch
    %31 = sbr.rel (0) target = $region33
  $region32: #{actor_network_graph_forward.1} parent=0 // pred_region
    _
  $region33: #{actor_network_graph_forward.1} parent=0 // pred_fallthru
    _
  // Predicated region
  $region34: #{actor_network_graph_forward.1} parent=0 // pred_check
    _
  $region35: #{actor_network_graph_forward.1} parent=0 // pred_check_branch
    %33 = sbr.rel (0) target = $region37
  $region36: #{actor_network_graph_forward.1} parent=0 // pred_region
    _
  $region37: #{actor_network_graph_forward.1} parent=0 // pred_fallthru
    _
  // Predicated region
  $region38: #{actor_network_graph_forward.1} parent=0 // pred_check
    _
  $region39: #{actor_network_graph_forward.1} parent=0 // pred_check_branch
    %35 = sbr.rel (0) target = $region41
  $region40: #{actor_network_graph_forward.1} parent=0 // pred_region
    _
  $region41: #{actor_network_graph_forward.1} parent=0 // pred_fallthru
    _
  // Predicated region
  $region42: #{actor_network_graph_forward.1} parent=0 // pred_check
    _
  $region43: #{actor_network_graph_forward.1} parent=0 // pred_check_branch
    %37 = sbr.rel (0) target = $region45
  $region44: #{actor_network_graph_forward.1} parent=0 // pred_region
    _
  $region45: #{actor_network_graph_forward.1} parent=0 // pred_fallthru
    _
  %v38 = vld [vmem:[%s0] sm:$0xff]
  %v39 = vld [vmem:[%s2] sm:$0xff]
  %v40 = vld [vmem:[%s2 + $0x8] sm:$0xff]
  %v41 = vld [vmem:[%s3] sm:$0x1]
  %v43 = vlaneseq
  %v44 = vshrl.u32 %v43, 7
  %v45 = vsub.s32 0, %v44
  %v46 = vrot.slane %v41, %v45
  %vm48 = vcmask 130048
  %v50 = vsel %vm48, %v38, 0
  %52 = vmatprep.subr.mxu0 0.0
  %53 = vmatpush1.msra.mxu0 %v39
  %54 = vmatprep.subr.mxu0 0.0
  %55 = vmatpush1.msra.mxu0 %v40
  %56 = vmatprep.subr.mxu0 0.0
  %57 = vmatpush1.msra.mxu0 0.0
  %58 = vmatprep.subr.mxu0 0.0
  %59 = vmatpush1.msra.mxu0 0.0
  %60 = vmatprep.subr.mxu0 0.0
  %61 = vmatpush1.msra.mxu0 0.0
  %62 = vmatprep.subr.mxu0 0.0
  %63 = vmatpush1.msra.mxu0 0.0
  %64 = vmatprep.subr.mxu0 0.0
  %65 = vmatpush1.msra.mxu0 0.0
  %66 = vmatprep.subr.mxu0 0.0
  %67 = vmatpush1.msra.mxu0 0.0
  %68 = vmatprep.subr.mxu0 0.0
  %69 = vmatpush1.msra.mxu0 0.0
  %70 = vmatprep.subr.mxu0 0.0
  %71 = vmatpush1.msra.mxu0 0.0
  %72 = vmatprep.subr.mxu0 0.0
  %73 = vmatpush1.msra.mxu0 0.0
  %74 = vmatprep.subr.mxu0 0.0
  %75 = vmatpush1.msra.mxu0 0.0
  %76 = vmatprep.subr.mxu0 0.0
  %77 = vmatpush1.msra.mxu0 0.0
  %78 = vmatprep.subr.mxu0 0.0
  %79 = vmatpush1.msra.mxu0 0.0
  %80 = vmatprep.subr.mxu0 0.0
  %81 = vmatpush1.msra.mxu0 0.0
  %82 = vmatprep.subr.mxu0 0.0
  %83 = vmatpush1.msra.mxu0 0.0
  %84 = vmatprep.subr.mxu0 0.0
  %85 = vmatpush1.msra.mxu0 0.0
  %86 = vmatprep.subr.mxu0 0.0
  %87 = vmatpush1.msra.mxu0 0.0
  %88 = vmatprep.subr.mxu0 0.0
  %89 = vmatpush1.msra.mxu0 0.0
  %90 = vmatprep.subr.mxu0 0.0
  %91 = vmatpush1.msra.mxu0 0.0
  %92 = vmatprep.subr.mxu0 0.0
  %93 = vmatpush1.msra.mxu0 0.0
  %94 = vmatprep.subr.mxu0 0.0
  %95 = vmatpush1.msra.mxu0 0.0
  %96 = vmatprep.subr.mxu0 0.0
  %97 = vmatpush1.msra.mxu0 0.0
  %98 = vmatprep.subr.mxu0 0.0
  %99 = vmatpush1.msra.mxu0 0.0
  %100 = vmatprep.subr.mxu0 0.0
  %101 = vmatpush1.msra.mxu0 0.0
  %102 = vmatprep.subr.mxu0 0.0
  %103 = vmatpush1.msra.mxu0 0.0
  %104 = vmatprep.subr.mxu0 0.0
  %105 = vmatpush1.msra.mxu0 0.0
  %106 = vmatprep.subr.mxu0 0.0
  %107 = vmatpush1.msra.mxu0 0.0
  %108 = vmatprep.subr.mxu0 0.0
  %109 = vmatpush1.msra.mxu0 0.0
  %110 = vmatprep.subr.mxu0 0.0
  %111 = vmatpush1.msra.mxu0 0.0
  %112 = vmatprep.subr.mxu0 0.0
  %113 = vmatpush1.msra.mxu0 0.0
  %114 = vmatprep.subr.mxu0 0.0
  %115 = vmatpush1.msra.mxu0 0.0
  %116 = vmatprep.mubr.f32.mxu0 0.0
  %117 = vmatmul.mubr.f32.gmra.mrb[0].mxu0 %v50
  %v118 = vpop.f32.mrb[0].mxu0
  %v119 = vadd.f32 %v46, %v118
  %v120 = vpop.f32.mrb[0].mxu0
  %121 = vdwg.mxu0
  %v122 = vtanh.pop %v119
  %v123 = vld [vmem:[%s4] sm:$0xff]
  %v124 = vld [vmem:[%s4 + $0x8] sm:$0xff]
  %v125 = vld [vmem:[%s4 + $0x10] sm:$0xff]
  %v126 = vld [vmem:[%s1] sm:$0xff]
  %v127 = vld [vmem:[%s5] sm:$0xff]
  %vm128 = vcmask 64512
  %v130 = vsel %vm128, %v126, 0
  %132 = vmatprep.subr.mxu0 0.0
  %133 = vmatpush1.msra.mxu0 %v127
  %134 = vmatprep.subr.mxu0 0.0
  %135 = vmatpush1.msra.mxu0 0.0
  %136 = vmatprep.subr.mxu0 0.0
  %137 = vmatpush1.msra.mxu0 0.0
  %138 = vmatprep.subr.mxu0 0.0
  %139 = vmatpush1.msra.mxu0 0.0
  %140 = vmatprep.subr.mxu0 0.0
  %141 = vmatpush1.msra.mxu0 0.0
  %142 = vmatprep.subr.mxu0 0.0
  %143 = vmatpush1.msra.mxu0 0.0
  %144 = vmatprep.subr.mxu0 0.0
  %145 = vmatpush1.msra.mxu0 0.0
  %146 = vmatprep.subr.mxu0 0.0
  %147 = vmatpush1.msra.mxu0 0.0
  %148 = vmatprep.subr.mxu0 0.0
  %149 = vmatpush1.msra.mxu0 0.0
  %150 = vmatprep.subr.mxu0 0.0
  %151 = vmatpush1.msra.mxu0 0.0
  %152 = vmatprep.subr.mxu0 0.0
  %153 = vmatpush1.msra.mxu0 0.0
  %154 = vmatprep.subr.mxu0 0.0
  %155 = vmatpush1.msra.mxu0 0.0
  %156 = vmatprep.subr.mxu0 0.0
  %157 = vmatpush1.msra.mxu0 0.0
  %158 = vmatprep.subr.mxu0 0.0
  %159 = vmatpush1.msra.mxu0 0.0
  %160 = vmatprep.subr.mxu0 0.0
  %161 = vmatpush1.msra.mxu0 0.0
  %162 = vmatprep.subr.mxu0 0.0
  %163 = vmatpush1.msra.mxu0 0.0
  %164 = vmatprep.subr.mxu0 0.0
  %165 = vmatpush1.msra.mxu0 0.0
  %166 = vmatprep.subr.mxu0 0.0
  %167 = vmatpush1.msra.mxu0 0.0
  %168 = vmatprep.subr.mxu0 0.0
  %169 = vmatpush1.msra.mxu0 0.0
  %170 = vmatprep.subr.mxu0 0.0
  %171 = vmatpush1.msra.mxu0 0.0
  %172 = vmatprep.subr.mxu0 0.0
  %173 = vmatpush1.msra.mxu0 0.0
  %174 = vmatprep.subr.mxu0 0.0
  %175 = vmatpush1.msra.mxu0 0.0
  %176 = vmatprep.subr.mxu0 0.0
  %177 = vmatpush1.msra.mxu0 0.0
  %178 = vmatprep.subr.mxu0 0.0
  %179 = vmatpush1.msra.mxu0 0.0
  %180 = vmatprep.subr.mxu0 0.0
  %181 = vmatpush1.msra.mxu0 0.0
  %182 = vmatprep.subr.mxu0 0.0
  %183 = vmatpush1.msra.mxu0 0.0
  %184 = vmatprep.subr.mxu0 0.0
  %185 = vmatpush1.msra.mxu0 0.0
  %186 = vmatprep.subr.mxu0 0.0
  %187 = vmatpush1.msra.mxu0 0.0
  %188 = vmatprep.subr.mxu0 0.0
  %189 = vmatpush1.msra.mxu0 0.0
  %190 = vmatprep.subr.mxu0 0.0
  %191 = vmatpush1.msra.mxu0 0.0
  %192 = vmatprep.subr.mxu0 0.0
  %193 = vmatpush1.msra.mxu0 0.0
  %194 = vmatprep.subr.mxu0 0.0
  %195 = vmatpush1.msra.mxu0 0.0
  %196 = vmatprep.mubr.f32.mxu0 0.0
  %197 = vmatmul.mubr.f32.gmra.mrb[0].mxu0 %v130
  %v198 = vpop.f32.mrb[0].mxu0
  %v199 = vadd.f32 0.0, %v198
  %v200 = vpop.f32.mrb[0].mxu0
  %201 = vdwg.mxu0
  %vm202 = vcmask 195584
  %v204 = vsel %vm202, %v122, 0
  %206 = vmatprep.subr.mxu0 0.0
  %207 = vmatpush1.msra.mxu0 %v123
  %208 = vmatprep.subr.mxu0 0.0
  %209 = vmatpush1.msra.mxu0 %v124
  %210 = vmatprep.subr.mxu0 0.0
  %211 = vmatpush1.msra.mxu0 %v125
  %212 = vmatprep.subr.mxu0 0.0
  %213 = vmatpush1.msra.mxu0 0.0
  %214 = vmatprep.subr.mxu0 0.0
  %215 = vmatpush1.msra.mxu0 0.0
  %216 = vmatprep.subr.mxu0 0.0
  %217 = vmatpush1.msra.mxu0 0.0
  %218 = vmatprep.subr.mxu0 0.0
  %219 = vmatpush1.msra.mxu0 0.0
  %220 = vmatprep.subr.mxu0 0.0
  %221 = vmatpush1.msra.mxu0 0.0
  %222 = vmatprep.subr.mxu0 0.0
  %223 = vmatpush1.msra.mxu0 0.0
  %224 = vmatprep.subr.mxu0 0.0
  %225 = vmatpush1.msra.mxu0 0.0
  %226 = vmatprep.subr.mxu0 0.0
  %227 = vmatpush1.msra.mxu0 0.0
  %228 = vmatprep.subr.mxu0 0.0
  %229 = vmatpush1.msra.mxu0 0.0
  %230 = vmatprep.subr.mxu0 0.0
  %231 = vmatpush1.msra.mxu0 0.0
  %232 = vmatprep.subr.mxu0 0.0
  %233 = vmatpush1.msra.mxu0 0.0
  %234 = vmatprep.subr.mxu0 0.0
  %235 = vmatpush1.msra.mxu0 0.0
  %236 = vmatprep.subr.mxu0 0.0
  %237 = vmatpush1.msra.mxu0 0.0
  %238 = vmatprep.subr.mxu0 0.0
  %239 = vmatpush1.msra.mxu0 0.0
  %240 = vmatprep.subr.mxu0 0.0
  %241 = vmatpush1.msra.mxu0 0.0
  %242 = vmatprep.subr.mxu0 0.0
  %243 = vmatpush1.msra.mxu0 0.0
  %244 = vmatprep.subr.mxu0 0.0
  %245 = vmatpush1.msra.mxu0 0.0
  %246 = vmatprep.subr.mxu0 0.0
  %247 = vmatpush1.msra.mxu0 0.0
  %248 = vmatprep.subr.mxu0 0.0
  %249 = vmatpush1.msra.mxu0 0.0
  %250 = vmatprep.subr.mxu0 0.0
  %251 = vmatpush1.msra.mxu0 0.0
  %252 = vmatprep.subr.mxu0 0.0
  %253 = vmatpush1.msra.mxu0 0.0
  %254 = vmatprep.subr.mxu0 0.0
  %255 = vmatpush1.msra.mxu0 0.0
  %256 = vmatprep.subr.mxu0 0.0
  %257 = vmatpush1.msra.mxu0 0.0
  %258 = vmatprep.subr.mxu0 0.0
  %259 = vmatpush1.msra.mxu0 0.0
  %260 = vmatprep.subr.mxu0 0.0
  %261 = vmatpush1.msra.mxu0 0.0
  %262 = vmatprep.subr.mxu0 0.0
  %263 = vmatpush1.msra.mxu0 0.0
  %264 = vmatprep.subr.mxu0 0.0
  %265 = vmatpush1.msra.mxu0 0.0
  %266 = vmatprep.subr.mxu0 0.0
  %267 = vmatpush1.msra.mxu0 0.0
  %268 = vmatprep.subr.mxu0 0.0
  %269 = vmatpush1.msra.mxu0 0.0
  %270 = vmatprep.mubr.f32.mxu0 0.0
  %271 = vmatmul.mubr.f32.gmra.mrb[0].mxu0 %v204
  %v272 = vpop.f32.mrb[0].mxu0
  %v273 = vadd.f32 %v199, %v272
  %v274 = vpop.f32.mrb[0].mxu0
  %275 = vdwg.mxu0
  %v276 = vld [vmem:[%s6] sm:$0x1]
  %v278 = vlaneseq
  %v279 = vshrl.u32 %v278, 7
  %v280 = vsub.s32 0, %v279
  %v281 = vrot.slane %v276, %v280
  %v283 = vadd.f32 %v273, %v281
  %v284 = vmax.f32 %v283, 0.0
  %v285 = vld [vmem:[%s7] sm:$0xff]
  %v286 = vld [vmem:[%s7 + $0x8] sm:$0xff]
  %v287 = vld [vmem:[%s7 + $0x10] sm:$0xff]
  %v288 = vld [vmem:[%s7 + $0x18] sm:$0xff]
  %v289 = vld [vmem:[%s8] sm:$0x1]
  %v291 = vlaneseq
  %v292 = vshrl.u32 %v291, 7
  %v293 = vsub.s32 0, %v292
  %v294 = vrot.slane %v289, %v293
  %vm296 = vcmask 261120
  %v298 = vsel %vm296, %v284, 0
  %300 = vmatprep.subr.mxu0 0.0
  %301 = vmatpush1.msra.mxu0 %v285
  %302 = vmatprep.subr.mxu0 0.0
  %303 = vmatpush1.msra.mxu0 %v286
  %304 = vmatprep.subr.mxu0 0.0
  %305 = vmatpush1.msra.mxu0 %v287
  %306 = vmatprep.subr.mxu0 0.0
  %307 = vmatpush1.msra.mxu0 %v288
  %308 = vmatprep.subr.mxu0 0.0
  %309 = vmatpush1.msra.mxu0 0.0
  %310 = vmatprep.subr.mxu0 0.0
  %311 = vmatpush1.msra.mxu0 0.0
  %312 = vmatprep.subr.mxu0 0.0
  %313 = vmatpush1.msra.mxu0 0.0
  %314 = vmatprep.subr.mxu0 0.0
  %315 = vmatpush1.msra.mxu0 0.0
  %316 = vmatprep.subr.mxu0 0.0
  %317 = vmatpush1.msra.mxu0 0.0
  %318 = vmatprep.subr.mxu0 0.0
  %319 = vmatpush1.msra.mxu0 0.0
  %320 = vmatprep.subr.mxu0 0.0
  %321 = vmatpush1.msra.mxu0 0.0
  %322 = vmatprep.subr.mxu0 0.0
  %323 = vmatpush1.msra.mxu0 0.0
  %324 = vmatprep.subr.mxu0 0.0
  %325 = vmatpush1.msra.mxu0 0.0
  %326 = vmatprep.subr.mxu0 0.0
  %327 = vmatpush1.msra.mxu0 0.0
  %328 = vmatprep.subr.mxu0 0.0
  %329 = vmatpush1.msra.mxu0 0.0
  %330 = vmatprep.subr.mxu0 0.0
  %331 = vmatpush1.msra.mxu0 0.0
  %332 = vmatprep.subr.mxu0 0.0
  %333 = vmatpush1.msra.mxu0 0.0
  %334 = vmatprep.subr.mxu0 0.0
  %335 = vmatpush1.msra.mxu0 0.0
  %336 = vmatprep.subr.mxu0 0.0
  %337 = vmatpush1.msra.mxu0 0.0
  %338 = vmatprep.subr.mxu0 0.0
  %339 = vmatpush1.msra.mxu0 0.0
  %340 = vmatprep.subr.mxu0 0.0
  %341 = vmatpush1.msra.mxu0 0.0
  %342 = vmatprep.subr.mxu0 0.0
  %343 = vmatpush1.msra.mxu0 0.0
  %344 = vmatprep.subr.mxu0 0.0
  %345 = vmatpush1.msra.mxu0 0.0
  %346 = vmatprep.subr.mxu0 0.0
  %347 = vmatpush1.msra.mxu0 0.0
  %348 = vmatprep.subr.mxu0 0.0
  %349 = vmatpush1.msra.mxu0 0.0
  %350 = vmatprep.subr.mxu0 0.0
  %351 = vmatpush1.msra.mxu0 0.0
  %352 = vmatprep.subr.mxu0 0.0
  %353 = vmatpush1.msra.mxu0 0.0
  %354 = vmatprep.subr.mxu0 0.0
  %355 = vmatpush1.msra.mxu0 0.0
  %356 = vmatprep.subr.mxu0 0.0
  %357 = vmatpush1.msra.mxu0 0.0
  %358 = vmatprep.subr.mxu0 0.0
  %359 = vmatpush1.msra.mxu0 0.0
  %360 = vmatprep.subr.mxu0 0.0
  %361 = vmatpush1.msra.mxu0 0.0
  %362 = vmatprep.subr.mxu0 0.0
  %363 = vmatpush1.msra.mxu0 0.0
  %364 = vmatprep.mubr.f32.mxu0 0.0
  %365 = vmatmul.mubr.f32.gmra.mrb[0].mxu0 %v298
  %v366 = vpop.f32.mrb[0].mxu0
  %v367 = vadd.f32 %v294, %v366
  %v368 = vpop.f32.mrb[0].mxu0
  %369 = vdwg.mxu0
  %v370 = vmax.f32 %v367, 0.0
  %v371 = vld [vmem:[%s9] sm:$0xff]
  %v372 = vld [vmem:[%s9 + $0x8] sm:$0xff]
  %v373 = vld [vmem:[%s9 + $0x10] sm:$0xff]
  %v374 = vld [vmem:[%s9 + $0x18] sm:$0xff]
  %v375 = vld [vmem:[%s10] sm:$0x1]
  %v377 = vlaneseq
  %v378 = vshrl.u32 %v377, 7
  %v379 = vsub.s32 0, %v378
  %v380 = vrot.slane %v375, %v379
  %v383 = vsel %vm296, %v370, 0
  %385 = vmatprep.subr.mxu0 0.0
  %386 = vmatpush1.msra.mxu0 %v371
  %387 = vmatprep.subr.mxu0 0.0
  %388 = vmatpush1.msra.mxu0 %v372
  %389 = vmatprep.subr.mxu0 0.0
  %390 = vmatpush1.msra.mxu0 %v373
  %391 = vmatprep.subr.mxu0 0.0
  %392 = vmatpush1.msra.mxu0 %v374
  %393 = vmatprep.subr.mxu0 0.0
  %394 = vmatpush1.msra.mxu0 0.0
  %395 = vmatprep.subr.mxu0 0.0
  %396 = vmatpush1.msra.mxu0 0.0
  %397 = vmatprep.subr.mxu0 0.0
  %398 = vmatpush1.msra.mxu0 0.0
  %399 = vmatprep.subr.mxu0 0.0
  %400 = vmatpush1.msra.mxu0 0.0
  %401 = vmatprep.subr.mxu0 0.0
  %402 = vmatpush1.msra.mxu0 0.0
  %403 = vmatprep.subr.mxu0 0.0
  %404 = vmatpush1.msra.mxu0 0.0
  %405 = vmatprep.subr.mxu0 0.0
  %406 = vmatpush1.msra.mxu0 0.0
  %407 = vmatprep.subr.mxu0 0.0
  %408 = vmatpush1.msra.mxu0 0.0
  %409 = vmatprep.subr.mxu0 0.0
  %410 = vmatpush1.msra.mxu0 0.0
  %411 = vmatprep.subr.mxu0 0.0
  %412 = vmatpush1.msra.mxu0 0.0
  %413 = vmatprep.subr.mxu0 0.0
  %414 = vmatpush1.msra.mxu0 0.0
  %415 = vmatprep.subr.mxu0 0.0
  %416 = vmatpush1.msra.mxu0 0.0
  %417 = vmatprep.subr.mxu0 0.0
  %418 = vmatpush1.msra.mxu0 0.0
  %419 = vmatprep.subr.mxu0 0.0
  %420 = vmatpush1.msra.mxu0 0.0
  %421 = vmatprep.subr.mxu0 0.0
  %422 = vmatpush1.msra.mxu0 0.0
  %423 = vmatprep.subr.mxu0 0.0
  %424 = vmatpush1.msra.mxu0 0.0
  %425 = vmatprep.subr.mxu0 0.0
  %426 = vmatpush1.msra.mxu0 0.0
  %427 = vmatprep.subr.mxu0 0.0
  %428 = vmatpush1.msra.mxu0 0.0
  %429 = vmatprep.subr.mxu0 0.0
  %430 = vmatpush1.msra.mxu0 0.0
  %431 = vmatprep.subr.mxu0 0.0
  %432 = vmatpush1.msra.mxu0 0.0
  %433 = vmatprep.subr.mxu0 0.0
  %434 = vmatpush1.msra.mxu0 0.0
  %435 = vmatprep.subr.mxu0 0.0
  %436 = vmatpush1.msra.mxu0 0.0
  %437 = vmatprep.subr.mxu0 0.0
  %438 = vmatpush1.msra.mxu0 0.0
  %439 = vmatprep.subr.mxu0 0.0
  %440 = vmatpush1.msra.mxu0 0.0
  %441 = vmatprep.subr.mxu0 0.0
  %442 = vmatpush1.msra.mxu0 0.0
  %443 = vmatprep.subr.mxu0 0.0
  %444 = vmatpush1.msra.mxu0 0.0
  %445 = vmatprep.subr.mxu0 0.0
  %446 = vmatpush1.msra.mxu0 0.0
  %447 = vmatprep.subr.mxu0 0.0
  %448 = vmatpush1.msra.mxu0 0.0
  %449 = vmatprep.mubr.f32.mxu0 0.0
  %450 = vmatmul.mubr.f32.gmra.mrb[0].mxu0 %v383
  %v451 = vpop.f32.mrb[0].mxu0
  %v452 = vadd.f32 %v380, %v451
  %v453 = vpop.f32.mrb[0].mxu0
  %454 = vdwg.mxu0
  %455 = vst [vmem:[%s11] sm:$0xff] %v452
  // Predicated region
  $region46: #{actor_network_graph_forward.1} parent=0 // pred_check
    _
  $region47: #{actor_network_graph_forward.1} parent=0 // pred_check_branch
    %457 = sbr.rel (0) target = $region49
  $region48: #{actor_network_graph_forward.1} parent=0 // pred_region
    _
  $region49: #{actor_network_graph_forward.1} parent=0 // pred_fallthru
    _
  // Predicated region
  $region50: #{actor_network_graph_forward.1} parent=0 // pred_check
    _
  $region51: #{actor_network_graph_forward.1} parent=0 // pred_check_branch
    %459 = sbr.rel (0) target = $region53
  $region52: #{actor_network_graph_forward.1} parent=0 // pred_region
    _
  $region53: #{actor_network_graph_forward.1} parent=0 // pred_fallthru
    _

</llo_original>
